<compile_context>
chip_gen: v7x
topology: tpu7x:2x2x1
jax: 0.10.0
libtpu: 0.0.40
codegen_flags: <defaults>
</compile_context>

<pallas_src>
import functools
import math

import jax
import jax.numpy as jnp
from jax import lax
from jax.experimental import pallas as pl
from jax.experimental.pallas import tpu as pltpu


def _round_up(x, m):
    return ((x + m - 1) // m) * m


def _normalize_scale_kernel(x_ref, o_ref, *, scale):
    """Row-wise F.normalize(x, dim=1) * sqrt(1/T), done once (hoisted out of NT-Xent)."""
    x = x_ref[...].astype(jnp.float32)
    ssq = jnp.sum(x * x, axis=1, keepdims=True)
    # rsqrt(max(ssq, eps^2)) == 1 / max(norm, eps) with eps = 1e-12 (F.normalize default)
    o_ref[...] = x * (lax.rsqrt(jnp.maximum(ssq, 1e-24)) * scale)


def _ntxent_kernel(rowt_ref, col_ref, out_ref, acc_ref, pos_ref, *,
                   batch_size, n_valid, n_total, self_exp):
    """One (row-block r, column-chunk c) tile of the NT-Xent loss.

    rowt_ref : (D, tm)    this row block, normalised * sqrt(1/T), pre-transposed
    col_ref  : (tn, D)    column chunk of all rows, normalised * sqrt(1/T)
    out_ref  : (1, 1, tm) per-row loss  log(denom_i) - pos_i/T  (written at last c)
    acc_ref  : (1, tm)    running rowsum of exp(sim/T) over valid columns
    pos_ref  : (1, tm)    running positive term (non-zero in exactly one chunk per row)
    """
    tm = rowt_ref.shape[1]
    tn = col_ref.shape[0]
    r = pl.program_id(0)
    c = pl.program_id(1)

    @pl.when(c == 0)
    def _():
        acc_ref[...] = jnp.zeros_like(acc_ref)
        pos_ref[...] = jnp.zeros_like(pos_ref)

    # (tn, tm) tile of the scaled Gram matrix: sim[j, i] = z_j . z_i / T.
    # Canonical (((1,),(0,)),((),())) contraction; the (D, tm) row operand is the RHS
    # and is invariant across the inner c loop (weight-stationary on the MXU).
    sim = lax.dot_general(col_ref[...], rowt_ref[...],
                          (((1,), (0,)), ((), ())),
                          preferred_element_type=jnp.float32)

    col_g = c * tn + lax.broadcasted_iota(jnp.int32, (tn, tm), 0)   # global column j
    row_g = r * tm + lax.broadcasted_iota(jnp.int32, (tn, tm), 1)   # global row    i

    # Denominator: rowsum over valid (non-padded) columns of exp(sim/T).  exp is the
    # binding EUP work at small D; the VPU mask/select work below hides under it.
    e = jnp.exp(sim)
    if n_valid != n_total:
        e = jnp.where(col_g < n_valid, e, 0.0)
    acc_ref[...] += jnp.sum(e, axis=0, keepdims=True)

    # Positive of row i sits at column (i + B) mod 2B; pick it out of this tile with a
    # one-hot mask on global indices (no partner DMA stream, works for any tiling;
    # mod expressed as add/select to avoid vector integer remainder).
    tgt = row_g + batch_size - jnp.where(row_g >= batch_size, n_valid, 0)
    pos_ref[...] += jnp.sum(jnp.where(col_g == tgt, sim, 0.0), axis=0, keepdims=True)

    @pl.when(c == pl.num_programs(1) - 1)
    def _():
        # Self column contributes exp(1/T) exactly for normalised rows; drop it.
        denom = acc_ref[...] - self_exp
        out_ref[...] = jnp.reshape(jnp.log(denom) - pos_ref[...], (1, 1, tm))


def _pick_tiles(n):
    """Row tile tm (lane dim of the (D, tm) row block), column tile tn, padded N."""
    if n > 256:
        tm = 256                      # fills the 256-wide MXU on v6e/v7x; 512 would
        n_pad = _round_up(n, tm)      # only double live intermediates / vreg pressure
    else:
        n_pad = _round_up(n, 8)
        tm = n_pad                    # single full row block (full-dim => lane-legal)
    tn = n_pad
    for cand in (512, 256, 128):
        if cand <= n_pad and n_pad % cand == 0:
            tn = cand
            break
    return tm, tn, n_pad


def contrastive_loss(emb_i, emb_j, temperature=0.5, matmul_dtype=jnp.float32):
    """NT-Xent / SimCLR loss over paired (B, D) embeddings.  Returns a scalar.

    matmul_dtype=jnp.bfloat16 is only worthwhile for large D (e.g. on v5e); the
    default f32 path keeps 1e-5 parity with the PyTorch reference.
    """
    assert emb_i.shape == emb_j.shape and emb_i.ndim == 2
    B, D = emb_i.shape
    N = 2 * B
    inv_t = 1.0 / float(temperature)

    tm, tn, n_pad = _pick_tiles(N)
    nb, nc = n_pad // tm, n_pad // tn

    # One HBM concat (+ zero row padding for awkward batch sizes).
    reps = jnp.concatenate([emb_i, emb_j], axis=0).astype(jnp.float32)
    if n_pad != N:
        reps = jnp.pad(reps, ((0, n_pad - N), (0, 0)))

    # Prologue: F.normalize + fold 1/temperature into both operands (sqrt(1/T) each),
    # done exactly once instead of on every NT-Xent grid step.
    tb = 256 if n_pad % 256 == 0 else n_pad
    reps_s = pl.pallas_call(
        functools.partial(_normalize_scale_kernel, scale=inv_t ** 0.5),
        out_shape=jax.ShapeDtypeStruct((n_pad, D), jnp.float32),
        grid=(n_pad // tb,),
        in_specs=[pl.BlockSpec((tb, D), lambda i: (i, 0))],
        out_specs=pl.BlockSpec((tb, D), lambda i: (i, 0)),
        compiler_params=pltpu.CompilerParams(dimension_semantics=("parallel",)),
    )(reps)

    cols = reps_s.astype(matmul_dtype)      # (n_pad, D): streamed column chunks
    rows_t = cols.T                         # (D, n_pad): one-time wrapper transpose

    kernel = functools.partial(
        _ntxent_kernel, batch_size=B, n_valid=N, n_total=n_pad,
        self_exp=math.exp(inv_t))

    per_row = pl.pallas_call(
        kernel,
        out_shape=jax.ShapeDtypeStruct((nb, 1, tm), jnp.float32),
        grid=(nb, nc),                                    # reduction (c) axis last
        in_specs=[
            pl.BlockSpec((D, tm), lambda r, c: (0, r)),   # row block, invariant in c
            pl.BlockSpec((tn, D), lambda r, c: (c, 0)),   # column chunk
        ],
        out_specs=pl.BlockSpec((1, 1, tm), lambda r, c: (r, 0, 0)),
        scratch_shapes=[pltpu.VMEM((1, tm), jnp.float32),   # denominator accumulator
                        pltpu.VMEM((1, tm), jnp.float32)],  # positive accumulator
        compiler_params=pltpu.CompilerParams(
            dimension_semantics=("parallel", "arbitrary")),
    )(rows_t, cols)

    per_row = per_row.reshape(-1)[:N]        # drop padded rows
    return jnp.sum(per_row) / N


def _reference_loss(emb_i, emb_j, temperature=0.5):
    """Pure-JAX reference mirroring the PyTorch ContrastiveLoss forward."""
    B = emb_i.shape[0]
    eps = 1e-12
    zi = emb_i / jnp.maximum(jnp.linalg.norm(emb_i, axis=1, keepdims=True), eps)
    zj = emb_j / jnp.maximum(jnp.linalg.norm(emb_j, axis=1, keepdims=True), eps)
    reps = jnp.concatenate([zi, zj], axis=0)
    sim = reps @ reps.T
    sim_ij = jnp.diagonal(sim, offset=B)
    sim_ji = jnp.diagonal(sim, offset=-B)
    positives = jnp.concatenate([sim_ij, sim_ji], axis=0)
    neg_mask = 1.0 - jnp.eye(2 * B, dtype=jnp.float32)
    nominator = jnp.exp(positives / temperature)
    denominator = jnp.sum(neg_mask * jnp.exp(sim / temperature), axis=1)
    loss_partial = -jnp.log(nominator / denominator)
    return jnp.sum(loss_partial) / (2.0 * B)


if __name__ == "__main__":
    base = jax.random.PRNGKey(0)

    def check(b, d, temperature, rtol):
        ki, kj = jax.random.split(jax.random.fold_in(base, b))
        emb_i = jax.random.normal(ki, (b, d), dtype=jnp.float32)
        emb_j = jax.random.normal(kj, (b, d), dtype=jnp.float32)
        loss = jax.block_until_ready(contrastive_loss(emb_i, emb_j, temperature))
        ref = jax.block_until_ready(_reference_loss(emb_i, emb_j, temperature))
        assert jnp.isfinite(loss), (b, d, loss)
        assert jnp.allclose(loss, ref, rtol=rtol, atol=1e-5), (b, d, loss, ref)

    # B=8 pairs, D=128 (the module's feature_dim): single aligned block.
    check(8, 128, 0.5, 1e-5)
    # B=6: N=12 rows padded to 16 -> exercises the padded-column mask path.
    check(6, 128, 0.5, 1e-5)
    # B=320: N=640 -> padded to 768, 3x3 grid -> exercises row/column tiling,
    # the denominator/positive accumulators, and the parallel+arbitrary semantics.
    check(320, 128, 0.5, 1e-4)

    print("KERNEL_OK")
</pallas_src>

<mosaic_0001>
module attributes {stable_mosaic.version = 11 : i64} {
  func.func @_normalize_scale_kernel(%arg0: i32, %arg1: memref<16x128xf32, #tpu.memory_space<vmem>>, %arg2: memref<16x128xf32, #tpu.memory_space<vmem>>) attributes {dimension_semantics = [#tpu.dimension_semantics<parallel>], iteration_bounds = array<i64: 1>, scalar_prefetch = 0 : i64, scratch_operands = 0 : i64, tpu.core_type = #tpu.core_type<tc>, window_params = [{transform_indices = @transform_0, window_bounds = array<i64: 16, 128>}, {transform_indices = @transform_1, window_bounds = array<i64: 16, 128>}]} {
    %c0 = arith.constant 0 : index
    %c0_0 = arith.constant 0 : index
    %0 = vector.load %arg1[%c0, %c0_0] : memref<16x128xf32, #tpu.memory_space<vmem>>, vector<16x128xf32>
    %1 = arith.mulf %0, %0 : vector<16x128xf32>
    %cst = arith.constant dense<0.000000e+00> : vector<16xf32>
    %2 = vector.multi_reduction <add>, %1, %cst [1] : vector<16x128xf32> to vector<16xf32>
    %3 = vector.shape_cast %2 : vector<16xf32> to vector<16x1xf32>
    %cst_1 = arith.constant 1.000000e-24 : f32
    %4 = vector.broadcast %cst_1 : f32 to vector<16x1xf32>
    %5 = arith.maximumf %3, %4 : vector<16x1xf32>
    %6 = math.rsqrt %5 : vector<16x1xf32>
    %cst_2 = arith.constant 1.41421354 : f32
    %7 = vector.broadcast %cst_2 : f32 to vector<16x1xf32>
    %8 = arith.mulf %6, %7 : vector<16x1xf32>
    %9 = vector.broadcast %8 : vector<16x1xf32> to vector<16x128xf32>
    %10 = arith.mulf %0, %9 : vector<16x128xf32>
    %c0_3 = arith.constant 0 : index
    %c0_4 = arith.constant 0 : index
    %11 = vector.load %arg2[%c0_3, %c0_4] : memref<16x128xf32, #tpu.memory_space<vmem>>, vector<16x128xf32>
    tpu.vector_store %arg2[%c0_3, %c0_4], %10 {strides = array<i32>} : memref<16x128xf32, #tpu.memory_space<vmem>>, vector<16x128xf32>,
    return
  }
  func.func @transform_0(%arg0: i32) -> (i32, i32) {
    %c0_i32 = arith.constant 0 : i32
    %c0_i32_0 = arith.constant 0 : i32
    return %arg0, %c0_i32 : i32, i32
  }
  func.func @transform_1(%arg0: i32) -> (i32, i32) {
    %c0_i32 = arith.constant 0 : i32
    %c0_i32_0 = arith.constant 0 : i32
    return %arg0, %c0_i32 : i32, i32
  }
}

</mosaic_0001>

<llo_original>
// kernel: tpu_custom_call.1
$region0: #{tpu_custom_call.1}
  #allocation0 [shape = 'u32[]', space=smem, size = 0x4, offset = 0x4, fixed_abs, tag = 'smem constant byte address 0x4 - core index']
  #allocation1 [shape = 'u32[144,128]{1,0:T(1,128)}', space=vmem, size = 0x12000, scoped, tag = 'internal scratch']
  %s0 = inlined_call_operand.hbm [shape: f32[16,128], index: 0, kind: input, shape index: {}]
  %s1 = inlined_call_operand.hbm [shape: f32[16,128], index: 1, kind: output, shape index: {}]
  %s2 = sld [smem:[#allocation0]]
  $region18: #{tpu_custom_call.1} parent=0
    _
  %s4 = ssub.s32 1, %s2
  %s5 = scalar_select 0, %s4, %s2
  $region1: #{tpu_custom_call.1} parent=0
    #allocation2 [shape = 'u8[8192]{0}', space=vmem, size = 0x2000, scoped, tag = 'input window, operand 0, single buffered']
    #allocation3 [shape = 's32[1]{0}', space=sflag, size = 0x4, scoped, tag = 'scoped memory for tpu_custom_call.1']
    #allocation4 [shape = 's32[1]{0}', space=sflag, size = 0x4, scoped, tag = 'scoped memory for tpu_custom_call.1']
    #allocation5 [shape = 'u8[8192]{0}', space=vmem, size = 0x2000, scoped, tag = 'output window, operand 0, single buffered']
    %6 = vsyncpa [#allocation3], 0
    %7 = vsyncpa [#allocation4], 0
    // Predicated region
    $region2: #{tpu_custom_call.1} parent=1 // pred_check
      _
    $region3: #{tpu_custom_call.1} parent=1 // pred_check_branch
      %9 = sbr.rel (0) target = $region5
    $region4: #{tpu_custom_call.1} parent=1 // pred_region
      %s11 = ssub.s32 256, 256
      %12 = vsyncadd [#allocation3], %s11
      %s13 = sshll.u32 [#allocation2], 4
      %s14 = int_to_ptr.vmem [resolvable:$true] %s13
      %19 = dma.hbm_to_vmem [thread:$0]  %s0, 256, %s14, [#allocation3], 128, 128, 8
    $region5: #{tpu_custom_call.1} parent=1 // pred_fallthru
      _
    // Predicated region
    $region6: #{tpu_custom_call.1} parent=1 // pred_check
      _
    $region7: #{tpu_custom_call.1} parent=1 // pred_check_branch
      %21 = sbr.rel (0) target = $region9
    $region8: #{tpu_custom_call.1} parent=1 // pred_region
      %22 = dma.done [#allocation3], 256
    $region9: #{tpu_custom_call.1} parent=1 // pred_fallthru
      _
    %v23 = vld [vmem:[#allocation2] sm:$0xff]
    %v24 = vld [vmem:[#allocation2 + $0x8] sm:$0xff]
    %v25 = vmul.f32 %v23, %v23
    %v26 = vmul.f32 %v24, %v24
    %27 = vadd.xlane.f32.xlu0 %v25
    %v28 = vpop.xlane.xlu0 %27
    %29 = vadd.xlane.f32.xlu0 %v26
    %v30 = vpop.xlane.xlu0 %29
    %v31 = vmax.f32 %v28, 1e-24
    %v32 = vmax.f32 %v30, 1e-24
    %v33 = vrsqrt.pop %v31
    %v34 = vrsqrt.pop %v32
    %v35 = vmul.f32 %v33, 1.4142135
    %v36 = vmul.f32 %v34, 1.4142135
    %v37 = vmul.f32 %v23, %v35
    %v38 = vmul.f32 %v24, %v36
    %39 = vst [vmem:[#allocation5] sm:$0xff] %v37
    %40 = vst [vmem:[#allocation5 + $0x8] sm:$0xff] %v38
    // Predicated region
    $region10: #{tpu_custom_call.1} parent=1 // pred_check
      _
    $region11: #{tpu_custom_call.1} parent=1 // pred_check_branch
      %42 = sbr.rel (0) target = $region13
    $region12: #{tpu_custom_call.1} parent=1 // pred_region
      %s44 = ssub.s32 256, 256
      %45 = vsyncadd [#allocation4], %s44
      %s46 = sshll.u32 [#allocation5], 4
      %s47 = int_to_ptr.vmem [resolvable:$true] %s46
      %52 = dma.vmem_to_hbm [thread:$0]  %s47, 256, %s1, [#allocation4], 128, 128, 8
    $region13: #{tpu_custom_call.1} parent=1 // pred_fallthru
      _
    // Predicated region
    $region14: #{tpu_custom_call.1} parent=1 // pred_check
      _
    $region15: #{tpu_custom_call.1} parent=1 // pred_check_branch
      %54 = sbr.rel (0) target = $region17
    $region16: #{tpu_custom_call.1} parent=1 // pred_region
      %55 = dma.done [#allocation4], 256
    $region17: #{tpu_custom_call.1} parent=1 // pred_fallthru
      _
    %56 = vsyncpa [#allocation3], 1
    %57 = vsyncpa [#allocation4], 1

</llo_original>
